<compile_context>
chip_gen: v6e
topology: v6e:2x2x1
jax: 0.10.0
libtpu: 0.0.40
codegen_flags: <defaults>
</compile_context>

<pallas_src>
import jax
import jax.numpy as jnp
from jax.experimental import pallas as pl
from jax.experimental.pallas import tpu as pltpu

_COL_CANDIDATES = (1024, 512, 256, 128)
_TARGET_BLOCK_ELEMS = 1 << 19   # ~2 MiB of f32 per input per pipeline buffer


def _round_up(x: int, m: int) -> int:
    return ((x + m - 1) // m) * m


def _pick_cols(n: int):
    """Pick a lane-dense column width; prefer copy-free, vreg-aligned rows."""
    for cols in _COL_CANDIDATES:
        if n % cols == 0 and (n // cols) % 8 == 0:
            return cols, 0
    for cols in _COL_CANDIDATES:
        if n % cols == 0:
            return cols, 0
    cols = _COL_CANDIDATES[-1]
    return cols, _round_up(n, cols) - n


def _make_kernel(n_rows: int, rows_per_block: int):
    groups = rows_per_block // 8  # rows_per_block is always a multiple of 8

    def kernel(p_ref, l_ref, sq_ref, cnt_ref):
        i = pl.program_id(0)
        # Cast after load; inputs may arrive bf16/f32 (all math stays f32).
        p = p_ref[...].astype(jnp.float32)
        l = l_ref[...].astype(jnp.float32)
        rows, cols = p.shape

        # Mask rows past the real extent (ragged last block reads unspecified
        # data which must not contribute to either sum).
        row = (jax.lax.broadcasted_iota(jnp.int32, (rows, cols), 0)
               + i * rows_per_block)
        in_bounds = row < n_rows

        valid = jnp.logical_and(in_bounds, jnp.logical_not(jnp.isnan(l)))
        diff = p - l
        sq = diff * diff
        # torch's final nan_to_num(loss): drop NaN squares even at valid labels
        # (e.g. NaN in preds where the label is finite).
        good = jnp.logical_and(valid, jnp.logical_not(jnp.isnan(sq)))
        contrib = jnp.where(good, sq, jnp.float32(0.0))
        cnt = valid.astype(jnp.float32)

        # Pure-VPU partial reduce: fold vreg-aligned groups of 8 rows into a
        # single (8, cols) slab.  Cross-lane reduction is left to the wrapper.
        sq_ref[...] = contrib.reshape(groups, 8, cols).sum(axis=0, keepdims=True)
        cnt_ref[...] = cnt.reshape(groups, 8, cols).sum(axis=0, keepdims=True)

    return kernel


def masked_mse(preds: jax.Array, labels: jax.Array) -> jax.Array:
    """Masked MSE matching the PyTorch MaskedMSE.forward semantics."""
    n = preds.size
    p_flat = preds.reshape(-1)
    l_flat = labels.reshape(-1)

    cols, pad = _pick_cols(n)
    if pad:
        # Fallback only when no lane width divides n (rare).  Padded labels are
        # NaN, so the pad contributes nothing to count or sum-of-squares.
        p_flat = jnp.concatenate([p_flat, jnp.zeros((pad,), p_flat.dtype)])
        l_flat = jnp.concatenate([l_flat, jnp.full((pad,), jnp.nan, l_flat.dtype)])

    m = (n + pad) // cols
    p2d = p_flat.reshape(m, cols)   # copy-free, lane-dense slab
    l2d = l_flat.reshape(m, cols)

    rows_per_block = min(_round_up(m, 8), max(8, _TARGET_BLOCK_ELEMS // cols))
    num_blocks = (m + rows_per_block - 1) // rows_per_block

    kernel = _make_kernel(m, rows_per_block)

    sq_part, cnt_part = pl.pallas_call(
        kernel,
        grid=(num_blocks,),
        in_specs=[
            pl.BlockSpec((rows_per_block, cols), lambda i: (i, 0)),
            pl.BlockSpec((rows_per_block, cols), lambda i: (i, 0)),
        ],
        out_specs=(
            pl.BlockSpec((1, 8, cols), lambda i: (i, 0, 0)),
            pl.BlockSpec((1, 8, cols), lambda i: (i, 0, 0)),
        ),
        out_shape=(
            jax.ShapeDtypeStruct((num_blocks, 8, cols), jnp.float32),
            jax.ShapeDtypeStruct((num_blocks, 8, cols), jnp.float32),
        ),
        compiler_params=pltpu.CompilerParams(
            dimension_semantics=("parallel",),
        ),
    )(p2d, l2d)

    sumsq = jnp.sum(sq_part)
    cnt = jnp.sum(cnt_part)
    # count == 0  =>  torch path yields 0.0 (all-NaN mask -> zeroed loss).
    return jnp.where(cnt > 0, sumsq / jnp.maximum(cnt, jnp.float32(1.0)),
                     jnp.float32(0.0))


def _reference(preds, labels):
    """Pure-JAX reproduction of the torch forward (for sanity check)."""
    mask = (~jnp.isnan(labels)).astype(jnp.float32)
    mask = mask / jnp.mean(mask)
    mask = jnp.where(jnp.isnan(mask), jnp.zeros_like(mask), mask)
    loss = jnp.square(preds - labels) * mask
    loss = jnp.where(jnp.isnan(loss), jnp.zeros_like(loss), loss)
    return jnp.mean(loss)


if __name__ == "__main__":
    key = jax.random.PRNGKey(0)
    k1, k2, k3, k4 = jax.random.split(key, 4)

    B, C, H, W = 2, 4, 16, 16  # NCHW, matches typical module inputs
    preds = jax.random.normal(k1, (B, C, H, W), dtype=jnp.float32)
    labels = jax.random.normal(k2, (B, C, H, W), dtype=jnp.float32)
    # Inject NaNs into ~30% of labels to exercise the masking path.
    nan_sel = jax.random.uniform(k3, (B, C, H, W)) < 0.3
    labels = jnp.where(nan_sel, jnp.nan, labels)
    # A few NaNs in preds at (possibly) valid-label positions: torch's final
    # nan->0 on `loss` zeroes these, which the kernel must reproduce.
    pred_nan_sel = jax.random.uniform(k4, (B, C, H, W)) < 0.02
    preds = jnp.where(pred_nan_sel, jnp.nan, preds)

    out = masked_mse(preds, labels)
    jax.block_until_ready(out)

    ref = _reference(preds, labels)
    assert jnp.isfinite(out), out
    assert jnp.allclose(out, ref, rtol=1e-4, atol=1e-6), (out, ref)

    print("KERNEL_OK")
</pallas_src>

<mosaic_0001>
module attributes {stable_mosaic.version = 11 : i64} {
  func.func @kernel(%arg0: i32, %arg1: memref<8x256xf32, #tpu.memory_space<vmem>>, %arg2: memref<8x256xf32, #tpu.memory_space<vmem>>, %arg3: memref<1x8x256xf32, #tpu.memory_space<vmem>>, %arg4: memref<1x8x256xf32, #tpu.memory_space<vmem>>) attributes {dimension_semantics = [#tpu.dimension_semantics<parallel>], iteration_bounds = array<i64: 1>, scalar_prefetch = 0 : i64, scratch_operands = 0 : i64, tpu.core_type = #tpu.core_type<tc>, window_params = [{transform_indices = @transform_0, window_bounds = array<i64: 8, 256>}, {transform_indices = @transform_1, window_bounds = array<i64: 8, 256>}, {transform_indices = @transform_2, window_bounds = array<i64: 1, 8, 256>}, {transform_indices = @transform_3, window_bounds = array<i64: 1, 8, 256>}]} {
    %c0 = arith.constant 0 : index
    %c0_0 = arith.constant 0 : index
    %0 = vector.load %arg1[%c0, %c0_0] : memref<8x256xf32, #tpu.memory_space<vmem>>, vector<8x256xf32>
    %c0_1 = arith.constant 0 : index
    %c0_2 = arith.constant 0 : index
    %1 = vector.load %arg2[%c0_1, %c0_2] : memref<8x256xf32, #tpu.memory_space<vmem>>, vector<8x256xf32>
    %2 = tpu.iota {dimensions = array<i32: 0>} : vector<8x256xi32>
    %c8_i32 = arith.constant 8 : i32
    %3 = arith.muli %arg0, %c8_i32 : i32
    %4 = vector.broadcast %3 : i32 to vector<8x256xi32>
    %5 = arith.addi %2, %4 : vector<8x256xi32>
    %c8_i32_3 = arith.constant 8 : i32
    %6 = vector.broadcast %c8_i32_3 : i32 to vector<8x256xi32>
    %7 = arith.cmpi slt, %5, %6 : vector<8x256xi32>
    %8 = arith.cmpf one, %1, %1 : vector<8x256xf32>
    %cst = arith.constant dense<true> : vector<8x256xi1>
    %9 = arith.xori %8, %cst : vector<8x256xi1>
    %10 = arith.andi %7, %9 : vector<8x256xi1>
    %11 = arith.subf %0, %1 : vector<8x256xf32>
    %12 = arith.mulf %11, %11 : vector<8x256xf32>
    %13 = arith.cmpf one, %12, %12 : vector<8x256xf32>
    %cst_4 = arith.constant dense<true> : vector<8x256xi1>
    %14 = arith.xori %13, %cst_4 : vector<8x256xi1>
    %15 = arith.andi %10, %14 : vector<8x256xi1>
    %cst_5 = arith.constant 0.000000e+00 : f32
    %16 = vector.broadcast %cst_5 : f32 to vector<8x256xf32>
    %17 = arith.select %15, %12, %16 : vector<8x256xi1>, vector<8x256xf32>
    %18 = arith.extui %10 : vector<8x256xi1> to vector<8x256xi32>
    %19 = arith.sitofp %18 : vector<8x256xi32> to vector<8x256xf32>
    %20 = vector.shape_cast %17 : vector<8x256xf32> to vector<1x8x256xf32>
    %cst_6 = arith.constant dense<0.000000e+00> : vector<8x256xf32>
    %21 = vector.multi_reduction <add>, %20, %cst_6 [0] : vector<1x8x256xf32> to vector<8x256xf32>
    %22 = vector.shape_cast %21 : vector<8x256xf32> to vector<1x8x256xf32>
    %c0_7 = arith.constant 0 : index
    %c0_8 = arith.constant 0 : index
    %c0_9 = arith.constant 0 : index
    %23 = vector.load %arg3[%c0_7, %c0_8, %c0_9] : memref<1x8x256xf32, #tpu.memory_space<vmem>>, vector<1x8x256xf32>
    tpu.vector_store %arg3[%c0_7, %c0_8, %c0_9], %22 {strides = array<i32>} : memref<1x8x256xf32, #tpu.memory_space<vmem>>, vector<1x8x256xf32>,
    %24 = vector.shape_cast %19 : vector<8x256xf32> to vector<1x8x256xf32>
    %cst_10 = arith.constant dense<0.000000e+00> : vector<8x256xf32>
    %25 = vector.multi_reduction <add>, %24, %cst_10 [0] : vector<1x8x256xf32> to vector<8x256xf32>
    %26 = vector.shape_cast %25 : vector<8x256xf32> to vector<1x8x256xf32>
    %c0_11 = arith.constant 0 : index
    %c0_12 = arith.constant 0 : index
    %c0_13 = arith.constant 0 : index
    %27 = vector.load %arg4[%c0_11, %c0_12, %c0_13] : memref<1x8x256xf32, #tpu.memory_space<vmem>>, vector<1x8x256xf32>
    tpu.vector_store %arg4[%c0_11, %c0_12, %c0_13], %26 {strides = array<i32>} : memref<1x8x256xf32, #tpu.memory_space<vmem>>, vector<1x8x256xf32>,
    return
  }
  func.func @transform_0(%arg0: i32) -> (i32, i32) {
    %c0_i32 = arith.constant 0 : i32
    %c0_i32_0 = arith.constant 0 : i32
    return %arg0, %c0_i32 : i32, i32
  }
  func.func @transform_1(%arg0: i32) -> (i32, i32) {
    %c0_i32 = arith.constant 0 : i32
    %c0_i32_0 = arith.constant 0 : i32
    return %arg0, %c0_i32 : i32, i32
  }
  func.func @transform_2(%arg0: i32) -> (i32, i32, i32) {
    %c0_i32 = arith.constant 0 : i32
    %c0_i32_0 = arith.constant 0 : i32
    %c0_i32_1 = arith.constant 0 : i32
    return %arg0, %c0_i32, %c0_i32_0 : i32, i32, i32
  }
  func.func @transform_3(%arg0: i32) -> (i32, i32, i32) {
    %c0_i32 = arith.constant 0 : i32
    %c0_i32_0 = arith.constant 0 : i32
    %c0_i32_1 = arith.constant 0 : i32
    return %arg0, %c0_i32, %c0_i32_0 : i32, i32, i32
  }
}

</mosaic_0001>

<llo_original>
// kernel: tpu_custom_call.1
$region0: #{tpu_custom_call.1}
  #allocation0 [shape = 'u32[]', space=smem, size = 0x4, offset = 0x4, fixed_abs, tag = 'smem constant byte address 0x4 - core index']
  #allocation1 [shape = 'u32[144,128]{1,0:T(1,128)}', space=vmem, size = 0x12000, scoped, tag = 'internal scratch']
  %s0 = inlined_call_operand.hbm [shape: f32[8,256], index: 0, kind: input, shape index: {}]
  %s1 = inlined_call_operand.hbm [shape: f32[8,256], index: 1, kind: input, shape index: {}]
  %s2 = inlined_call_operand.hbm [shape: f32[1,8,256], index: 2, kind: output, shape index: {0}]
  %s3 = inlined_call_operand.hbm [shape: f32[1,8,256], index: 3, kind: output, shape index: {1}]
  %4 = xla_tuple %s2, %s3
  %s5 = sld [smem:[#allocation0]]
  $region34: #{tpu_custom_call.1} parent=0
    _
  %s7 = ssub.s32 1, %s5
  %s8 = scalar_select 0, %s7, %s5
  $region1: #{tpu_custom_call.1} parent=0
    #allocation2 [shape = 'u8[8192]{0}', space=vmem, size = 0x2000, scoped, tag = 'input window, operand 0, single buffered']
    #allocation3 [shape = 's32[1]{0}', space=sflag, size = 0x4, scoped, tag = 'scoped memory for tpu_custom_call.1']
    #allocation4 [shape = 's32[1]{0}', space=sflag, size = 0x4, scoped, tag = 'scoped memory for tpu_custom_call.1']
    #allocation5 [shape = 'u8[8192]{0}', space=vmem, size = 0x2000, scoped, tag = 'input window, operand 1, single buffered']
    #allocation6 [shape = 's32[1]{0}', space=sflag, size = 0x4, scoped, tag = 'scoped memory for tpu_custom_call.1']
    #allocation7 [shape = 'u8[8192]{0}', space=vmem, size = 0x2000, scoped, tag = 'output window, operand 0, single buffered']
    #allocation8 [shape = 'u8[8192]{0}', space=vmem, size = 0x2000, scoped, tag = 'output window, operand 1, single buffered']
    #allocation9 [shape = 's32[1]{0}', space=sflag, size = 0x4, scoped, tag = 'scoped memory for tpu_custom_call.1']
    %9 = vsyncpa [#allocation3], 0
    %10 = vsyncpa [#allocation6], 0
    %11 = vsyncpa [#allocation4], 0
    %12 = vsyncpa [#allocation9], 0
    // Predicated region
    $region2: #{tpu_custom_call.1} parent=1 // pred_check
      _
    $region3: #{tpu_custom_call.1} parent=1 // pred_check_branch
      %14 = sbr.rel (0) target = $region5
    $region4: #{tpu_custom_call.1} parent=1 // pred_region
      %s16 = ssub.s32 256, 256
      %17 = vsyncadd [#allocation3], %s16
      %s19 = sshll.u32 [#allocation2], 4
      %s20 = int_to_ptr.vmem [resolvable:$true] %s19
      %22 = dma.hbm_to_vmem [thread:$0]  %s0, 256, %s20, [#allocation3]
    $region5: #{tpu_custom_call.1} parent=1 // pred_fallthru
      _
    // Predicated region
    $region6: #{tpu_custom_call.1} parent=1 // pred_check
      _
    $region7: #{tpu_custom_call.1} parent=1 // pred_check_branch
      %24 = sbr.rel (0) target = $region9
    $region8: #{tpu_custom_call.1} parent=1 // pred_region
      %s26 = ssub.s32 256, 256
      %27 = vsyncadd [#allocation6], %s26
      %s29 = sshll.u32 [#allocation5], 4
      %s30 = int_to_ptr.vmem [resolvable:$true] %s29
      %32 = dma.hbm_to_vmem [thread:$0]  %s1, 256, %s30, [#allocation6]
    $region9: #{tpu_custom_call.1} parent=1 // pred_fallthru
      _
    // Predicated region
    $region10: #{tpu_custom_call.1} parent=1 // pred_check
      _
    $region11: #{tpu_custom_call.1} parent=1 // pred_check_branch
      %34 = sbr.rel (0) target = $region13
    $region12: #{tpu_custom_call.1} parent=1 // pred_region
      %35 = dma.done [#allocation3], 256
    $region13: #{tpu_custom_call.1} parent=1 // pred_fallthru
      _
    // Predicated region
    $region14: #{tpu_custom_call.1} parent=1 // pred_check
      _
    $region15: #{tpu_custom_call.1} parent=1 // pred_check_branch
      %37 = sbr.rel (0) target = $region17
    $region16: #{tpu_custom_call.1} parent=1 // pred_region
      %38 = dma.done [#allocation6], 256
    $region17: #{tpu_custom_call.1} parent=1 // pred_fallthru
      _
    %v39 = vld [vmem:[#allocation2] sm:$0xff]
    %v40 = vld [vmem:[#allocation2 + $0x8] sm:$0xff]
    %v41 = vld [vmem:[#allocation5] sm:$0xff]
    %v42 = vld [vmem:[#allocation5 + $0x8] sm:$0xff]
    %v43 = vlaneseq
    %v44 = vshrl.u32 %v43, 7
    %s45 = smul.u32 0, 8
    %v46 = vstv %s45
    %v47 = vadd.s32 %v44, %v46
    %vm48 = vcmp.lt.s32.totalorder %v47, 8
    %vm49 = vcmp.ne.f32.partialorder %v41, %v41
    %vm50 = vcmp.ne.f32.partialorder %v42, %v42
    %vm51 = vmxor %vm49, 1
    %vm52 = vmxor %vm50, 1
    %vm53 = vmand %vm48, %vm51
    %vm54 = vmand %vm48, %vm52
    %v55 = vsub.f32 %v39, %v41
    %v56 = vsub.f32 %v40, %v42
    %v57 = vmul.f32 %v55, %v55
    %v58 = vmul.f32 %v56, %v56
    %vm59 = vcmp.ne.f32.partialorder %v57, %v57
    %vm60 = vcmp.ne.f32.partialorder %v58, %v58
    %vm61 = vmxor %vm59, 1
    %vm62 = vmxor %vm60, 1
    %vm63 = vmand %vm53, %vm61
    %vm64 = vmand %vm54, %vm62
    %v65 = vsel %vm63, %v57, 0.0
    %v66 = vsel %vm64, %v58, 0.0
    %v67 = vsel %vm53, 1, 0
    %v68 = vsel %vm54, 1, 0
    %v69 = vcvt.s32.f32 %v67
    %v70 = vcvt.s32.f32 %v68
    %v71 = vadd.f32 %v65, 0.0
    %v72 = vadd.f32 %v66, 0.0
    %73 = vst [vmem:[#allocation7] sm:$0xff] %v71
    %74 = vst [vmem:[#allocation7 + $0x8] sm:$0xff] %v72
    %v75 = vadd.f32 %v69, 0.0
    %v76 = vadd.f32 %v70, 0.0
    %77 = vst [vmem:[#allocation8] sm:$0xff] %v75
    %78 = vst [vmem:[#allocation8 + $0x8] sm:$0xff] %v76
    // Predicated region
    $region18: #{tpu_custom_call.1} parent=1 // pred_check
      _
    $region19: #{tpu_custom_call.1} parent=1 // pred_check_branch
      %80 = sbr.rel (0) target = $region21
    $region20: #{tpu_custom_call.1} parent=1 // pred_region
      %s82 = ssub.s32 256, 256
      %83 = vsyncadd [#allocation4], %s82
      %s85 = sshll.u32 [#allocation7], 4
      %s86 = int_to_ptr.vmem [resolvable:$true] %s85
      %88 = dma.vmem_to_hbm [thread:$0]  %s86, 256, %s2, [#allocation4]
    $region21: #{tpu_custom_call.1} parent=1 // pred_fallthru
      _
    // Predicated region
    $region22: #{tpu_custom_call.1} parent=1 // pred_check
      _
    $region23: #{tpu_custom_call.1} parent=1 // pred_check_branch
      %90 = sbr.rel (0) target = $region25
    $region24: #{tpu_custom_call.1} parent=1 // pred_region
      %s92 = ssub.s32 256, 256
      %93 = vsyncadd [#allocation9], %s92
      %s95 = sshll.u32 [#allocation8], 4
      %s96 = int_to_ptr.vmem [resolvable:$true] %s95
      %98 = dma.vmem_to_hbm [thread:$0]  %s96, 256, %s3, [#allocation9]
    $region25: #{tpu_custom_call.1} parent=1 // pred_fallthru
      _
    // Predicated region
    $region26: #{tpu_custom_call.1} parent=1 // pred_check
      _
    $region27: #{tpu_custom_call.1} parent=1 // pred_check_branch
      %100 = sbr.rel (0) target = $region29
    $region28: #{tpu_custom_call.1} parent=1 // pred_region
      %101 = dma.done [#allocation4], 256
    $region29: #{tpu_custom_call.1} parent=1 // pred_fallthru
      _
    // Predicated region
    $region30: #{tpu_custom_call.1} parent=1 // pred_check
      _
    $region31: #{tpu_custom_call.1} parent=1 // pred_check_branch
      %103 = sbr.rel (0) target = $region33
    $region32: #{tpu_custom_call.1} parent=1 // pred_region
      %104 = dma.done [#allocation9], 256
    $region33: #{tpu_custom_call.1} parent=1 // pred_fallthru
      _
    %105 = vsyncpa [#allocation3], 1
    %106 = vsyncpa [#allocation6], 1
    %107 = vsyncpa [#allocation4], 1
    %108 = vsyncpa [#allocation9], 1

</llo_original>
